<compile_context>
chip_gen: v7x
topology: tpu7x:2x2x1
jax: 0.10.0
libtpu: 0.0.40
codegen_flags: <defaults>
</compile_context>

<pallas_src>
import math

import jax
import jax.numpy as jnp
from jax.experimental import pallas as pl
from jax.experimental.pallas import tpu as pltpu

_NEG_BIG = -1e30   # finite "-inf": keeps the online-LSE rescaling NaN-free
_TV_PREF = 8192    # preferred lane-dense vocab tile (HBM-stream dominated)


def _device_kind():
    try:
        return jax.devices()[0].device_kind.lower()
    except Exception:
        return ""


def _default_num_cores():
    # v7x has 2 TensorCores per chip; v5e / v6e have 1.
    return 2 if "v7" in _device_kind() else 1


def _vmem_capacity_bytes():
    try:
        return int(pltpu.get_tpu_info().vmem_capacity_bytes)
    except Exception:
        return (64 << 20) if "v7" in _device_kind() else (128 << 20)


def _pick_tv(V, D, vmem_bytes):
    """Largest lane-dense vocab tile keeping the double-buffered f32 uk stream
    within ~1/4 of physical VMEM (lane padding: D pads to >= 128)."""
    lane_d = max(D, 128)
    budget = vmem_bytes // 4
    tv_vmem = max(128, (budget // (2 * lane_d * 4)) // 128 * 128)
    tv_vocab = pl.cdiv(V, 128) * 128
    return max(128, min(_TV_PREF, tv_vmem, tv_vocab)), tv_vmem


def _make_nll_kernel(V, tv, tiles_per_core):
    def kernel(vc_ref, uk_ref, m_out_ref, s_out_ref, m_scr, s_scr):
        c = pl.program_id(0)   # core / vocab-split index
        k = pl.program_id(1)   # vocab tile within this core's range

        @pl.when(k == 0)
        def _():
            m_scr[...] = jnp.full_like(m_scr, _NEG_BIG)
            s_scr[...] = jnp.zeros_like(s_scr)

        # (B, tv) lane-dense scores: bf16 operands (uk cast per tile), f32 acc.
        scores = jax.lax.dot_general(
            vc_ref[...], uk_ref[...].astype(jnp.bfloat16),
            dimension_numbers=(((1,), (1,)), ((), ())),
            preferred_element_type=jnp.float32)

        def accumulate(sc):
            # Online logsumexp over the vocab (grid) axis; f32 state in scratch.
            m_old = m_scr[...]                                            # (B, 1)
            m_new = jnp.maximum(m_old, jnp.max(sc, axis=-1, keepdims=True))
            s_scr[...] = (s_scr[...] * jnp.exp(m_old - m_new)
                          + jnp.sum(jnp.exp(sc - m_new), axis=-1, keepdims=True))
            m_scr[...] = m_new

        tile = c * tiles_per_core + k
        is_tail = (tile + 1) * tv > V     # last real tile or a padding tile

        @pl.when(jnp.logical_not(is_tail))
        def _():                          # interior tiles: no masking work at all
            accumulate(scores)

        @pl.when(is_tail)
        def _():                          # mask vocab columns past V
            col = tile * tv + jax.lax.broadcasted_iota(jnp.int32, scores.shape, 1)
            accumulate(jnp.where(col < V, scores, _NEG_BIG))

        @pl.when(k == tiles_per_core - 1)
        def _():                          # single store per core (epilogue)
            m_out_ref[...] = m_scr[...]
            s_out_ref[...] = s_scr[...]

    return kernel


def wordvec_nll_loss(center_emb, context_emb, center_word, context_word, *,
                     tv=None, n_cores=None):
    """Pallas implementation of WordVec.negative_log_likelihood_loss."""
    V, D = context_emb.shape
    B = center_word.shape[0]

    if n_cores is None:
        n_cores = _default_num_cores()
    vmem_cap = _vmem_capacity_bytes()
    if tv is None:
        tv, tv_vmem = _pick_tv(V, D, vmem_cap)
    else:
        tv = max(128, (tv // 128) * 128)
        tv_vmem = tv
    vmem_capped = tv_vmem < _TV_PREF   # tile size forced small -> deeper pipeline

    # Glue: embedding lookups (gather) stay in plain JAX.
    vc = jnp.take(center_emb, center_word, axis=0).astype(jnp.float32)    # (B, D)
    u0 = jnp.take(context_emb, context_word, axis=0).astype(jnp.float32)  # (B, D)

    # First term -(u0 . vc): tiny, stays in f32 JAX.
    first = -jnp.sum(u0 * vc, axis=1)                                     # (B,)

    # Pad the batch to the sublane multiple (8); padded rows are sliced off later.
    B_pad = ((B + 7) // 8) * 8
    if B_pad != B:
        vc = jnp.zeros((B_pad, D), jnp.float32).at[:B].set(vc)

    # vc is tiny (B x D): cast to bf16 once outside.  uk streams in f32 (one HBM
    # pass, no separate cast pass over the whole table) and is cast in-kernel.
    vc_k = vc.astype(jnp.bfloat16)
    uk_k = context_emb.astype(jnp.float32)                                # (V, D)

    n_tiles = pl.cdiv(V, tv)
    tiles_per_core = pl.cdiv(n_tiles, n_cores)
    last_tile = n_tiles - 1

    kernel = _make_nll_kernel(V, tv, tiles_per_core)

    def uk_index_map(c, k):
        # Clamp padding tiles onto the last real tile; the kernel masks them.
        return (jnp.minimum(c * tiles_per_core + k, last_tile), 0)

    n_buf = 3 if (vmem_capped and tiles_per_core >= 3) else 2
    uk_spec_kwargs = {}
    if n_buf == 3:
        uk_spec_kwargs["pipeline_mode"] = pl.Buffered(3)
    uk_spec = pl.BlockSpec((tv, D), uk_index_map, **uk_spec_kwargs)

    out_part = jax.ShapeDtypeStruct((n_cores, B_pad, 1), jnp.float32)
    part_spec = pl.BlockSpec((None, B_pad, 1), lambda c, k: (c, 0, 0))

    # Explicit VMEM limit: n_buf uk tiles (lane-padded) + vc + score tile + slop,
    # never above 3/4 of physical capacity (budgets correctly on v7x's 64 MiB).
    lane_d = max(D, 128)
    need = (n_buf * tv * lane_d * 4 + B_pad * lane_d * 2
            + B_pad * tv * 4 + (4 << 20))
    vmem_limit = int(min(vmem_cap * 3 // 4, max(32 << 20, need)))

    cost = pl.CostEstimate(
        flops=2 * B_pad * V * D,
        transcendentals=B_pad * V,                     # exp in the online LSE
        bytes_accessed=V * D * 4 + B_pad * D * 2 + 2 * n_cores * B_pad * 4)

    m_parts, s_parts = pl.pallas_call(
        kernel,
        out_shape=(out_part, out_part),
        grid_spec=pltpu.PrefetchScalarGridSpec(
            num_scalar_prefetch=0,
            grid=(n_cores, tiles_per_core),
            in_specs=[
                pl.BlockSpec((B_pad, D), lambda c, k: (0, 0)),   # vc (resident)
                uk_spec,                                         # uk vocab tile
            ],
            out_specs=(part_spec, part_spec),
            scratch_shapes=[pltpu.VMEM((B_pad, 1), jnp.float32),
                            pltpu.VMEM((B_pad, 1), jnp.float32)],
        ),
        compiler_params=pltpu.CompilerParams(
            dimension_semantics=("parallel", "arbitrary"),
            vmem_limit_bytes=vmem_limit,
        ),
        cost_estimate=cost,
    )(vc_k, uk_k)

    # Merge per-core logsumexp partials.  Cores that only saw masked/padding
    # tiles (m == _NEG_BIG) are excluded explicitly (no reliance on underflow).
    m_parts = m_parts[..., 0]                                   # (n_cores, B_pad)
    s_parts = s_parts[..., 0]
    valid = m_parts > (_NEG_BIG * 0.5)
    m_tot = jnp.max(jnp.where(valid, m_parts, -jnp.inf), axis=0)          # (B_pad,)
    s_tot = jnp.sum(jnp.where(valid, s_parts * jnp.exp(m_parts - m_tot), 0.0),
                    axis=0)
    lse = m_tot + jnp.log(s_tot)                                # (B_pad,)

    return jnp.mean(first + lse[:B])


def init_wordvec_params(V, D, key):
    """Deterministic parameter init mirroring WordVec.__init__."""
    k1, k2 = jax.random.split(key)
    std = 1.0 / math.sqrt(D)
    center = jnp.clip(jax.random.normal(k1, (V, D), jnp.float32) * std, -1.0, 1.0)
    context = jnp.clip(jax.random.normal(k2, (V, D), jnp.float32) * std,
                       -1.0 + 1e-10, 1.0 - 1e-10)
    return center, context


def _reference_nll(center_emb, context_emb, center_word, context_word):
    vc = center_emb[center_word]            # (B, D)
    u0 = context_emb[context_word]          # (B, D)
    uk = context_emb                        # (V, D)
    first = -jnp.sum(u0 * vc, axis=1)                                   # (B,)
    second = jax.scipy.special.logsumexp(uk @ vc.T, axis=0)             # (B,)
    return jnp.mean(first + second)


if __name__ == "__main__":
    V, D, B = 512, 64, 8

    key = jax.random.PRNGKey(0)
    kp, kc, kx = jax.random.split(key, 3)
    center_emb, context_emb = init_wordvec_params(V, D, kp)

    center_word = jax.random.randint(kc, (B,), 0, V, dtype=jnp.int32)
    context_word = jax.random.randint(kx, (B,), 0, V, dtype=jnp.int32)

    loss = wordvec_nll_loss(center_emb, context_emb, center_word, context_word)
    loss = jax.block_until_ready(loss)

    ref = _reference_nll(center_emb, context_emb, center_word, context_word)
    # bf16 MXU operands drift slightly from the pure-f32 reference.
    assert jnp.allclose(loss, ref, rtol=1e-2, atol=2e-2), (loss, ref)

    print("KERNEL_OK")
</pallas_src>

<mosaic_0001>
module attributes {stable_mosaic.version = 11 : i64} {
  func.func @kernel(%arg0: i32, %arg1: i32, %arg2: memref<8x64xbf16, #tpu.memory_space<vmem>>, %arg3: memref<512x64xf32, #tpu.memory_space<vmem>>, %arg4: memref<1x8x1xf32, #tpu.memory_space<vmem>>, %arg5: memref<1x8x1xf32, #tpu.memory_space<vmem>>, %arg6: memref<8x1xf32, #tpu.memory_space<vmem>>, %arg7: memref<8x1xf32, #tpu.memory_space<vmem>>) attributes {dimension_semantics = [#tpu.dimension_semantics<parallel>, #tpu.dimension_semantics<arbitrary>], iteration_bounds = array<i64: 1, 1>, scalar_prefetch = 0 : i64, scratch_operands = 2 : i64, tpu.core_type = #tpu.core_type<tc>, window_params = [{pipeline_mode = #tpu.pipeline_mode<synchronous>, transform_indices = @transform_0, window_bounds = array<i64: 8, 64>}, {transform_indices = @transform_1, window_bounds = array<i64: 512, 64>}, {transform_indices = @transform_2, window_bounds = array<i64: 1, 8, 1>}, {transform_indices = @transform_3, window_bounds = array<i64: 1, 8, 1>}]} {
    %c0_i32 = arith.constant 0 : i32
    %0 = arith.cmpi eq, %arg1, %c0_i32 : i32
    %1 = arith.extui %0 : i1 to i32
    %c0_i32_0 = arith.constant 0 : i32
    %2 = arith.cmpi ne, %1, %c0_i32_0 : i32
    scf.if %2 {
      %cst_10 = arith.constant -1.000000e+30 : f32
      %20 = vector.broadcast %cst_10 : f32 to vector<8x1xf32>
      %c0_11 = arith.constant 0 : index
      %c0_12 = arith.constant 0 : index
      %21 = vector.load %arg6[%c0_11, %c0_12] : memref<8x1xf32, #tpu.memory_space<vmem>>, vector<8x1xf32>
      tpu.vector_store %arg6[%c0_11, %c0_12], %20 {strides = array<i32>} : memref<8x1xf32, #tpu.memory_space<vmem>>, vector<8x1xf32>,
      %cst_13 = arith.constant 0.000000e+00 : f32
      %22 = vector.broadcast %cst_13 : f32 to vector<8x1xf32>
      %c0_14 = arith.constant 0 : index
      %c0_15 = arith.constant 0 : index
      %23 = vector.load %arg7[%c0_14, %c0_15] : memref<8x1xf32, #tpu.memory_space<vmem>>, vector<8x1xf32>
      tpu.vector_store %arg7[%c0_14, %c0_15], %22 {strides = array<i32>} : memref<8x1xf32, #tpu.memory_space<vmem>>, vector<8x1xf32>,
    } else {
    }
    %c0 = arith.constant 0 : index
    %c0_1 = arith.constant 0 : index
    %3 = vector.load %arg2[%c0, %c0_1] : memref<8x64xbf16, #tpu.memory_space<vmem>>, vector<8x64xbf16>
    %c0_2 = arith.constant 0 : index
    %c0_3 = arith.constant 0 : index
    %4 = vector.load %arg3[%c0_2, %c0_3] : memref<512x64xf32, #tpu.memory_space<vmem>>, vector<512x64xf32>
    %5 = arith.truncf %4 : vector<512x64xf32> to vector<512x64xbf16>
    %cst = arith.constant dense<0.000000e+00> : vector<8x512xf32>
    %6 = tpu.matmul %3, %5, %cst {dimension_numbers = #tpu.dot_dimension_numbers<[1], [1], [0], [0], [0, 0, 1, 0], [], []>} : vector<8x64xbf16>, vector<512x64xbf16>, vector<8x512xf32> -> vector<8x512xf32>
    %c1_i32 = arith.constant 1 : i32
    %7 = arith.muli %arg0, %c1_i32 : i32
    %8 = arith.addi %7, %arg1 : i32
    %c1_i32_4 = arith.constant 1 : i32
    %9 = arith.addi %8, %c1_i32_4 : i32
    %c512_i32 = arith.constant 512 : i32
    %10 = arith.muli %9, %c512_i32 : i32
    %c512_i32_5 = arith.constant 512 : i32
    %11 = arith.cmpi sgt, %10, %c512_i32_5 : i32
    %true = arith.constant true
    %12 = arith.xori %11, %true : i1
    %13 = arith.extui %12 : i1 to i32
    %c0_i32_6 = arith.constant 0 : i32
    %14 = arith.cmpi ne, %13, %c0_i32_6 : i32
    scf.if %14 {
      %c0_10 = arith.constant 0 : index
      %c0_11 = arith.constant 0 : index
      %20 = vector.load %arg6[%c0_10, %c0_11] : memref<8x1xf32, #tpu.memory_space<vmem>>, vector<8x1xf32>
      %cst_12 = arith.constant dense<0xFF800000> : vector<8xf32>
      %21 = vector.multi_reduction <maximumf>, %6, %cst_12 [1] : vector<8x512xf32> to vector<8xf32>
      %22 = vector.shape_cast %21 : vector<8xf32> to vector<8x1xf32>
      %23 = arith.maximumf %20, %22 : vector<8x1xf32>
      %c0_13 = arith.constant 0 : index
      %c0_14 = arith.constant 0 : index
      %24 = vector.load %arg7[%c0_13, %c0_14] : memref<8x1xf32, #tpu.memory_space<vmem>>, vector<8x1xf32>
      %25 = arith.subf %20, %23 : vector<8x1xf32>
      %26 = math.exp %25 : vector<8x1xf32>
      %27 = arith.mulf %24, %26 : vector<8x1xf32>
      %28 = vector.broadcast %23 : vector<8x1xf32> to vector<8x512xf32>
      %29 = arith.subf %6, %28 : vector<8x512xf32>
      %30 = math.exp %29 : vector<8x512xf32>
      %cst_15 = arith.constant dense<0.000000e+00> : vector<8xf32>
      %31 = vector.multi_reduction <add>, %30, %cst_15 [1] : vector<8x512xf32> to vector<8xf32>
      %32 = vector.shape_cast %31 : vector<8xf32> to vector<8x1xf32>
      %33 = arith.addf %27, %32 : vector<8x1xf32>
      %c0_16 = arith.constant 0 : index
      %c0_17 = arith.constant 0 : index
      %34 = vector.load %arg7[%c0_16, %c0_17] : memref<8x1xf32, #tpu.memory_space<vmem>>, vector<8x1xf32>
      tpu.vector_store %arg7[%c0_16, %c0_17], %33 {strides = array<i32>} : memref<8x1xf32, #tpu.memory_space<vmem>>, vector<8x1xf32>,
      %c0_18 = arith.constant 0 : index
      %c0_19 = arith.constant 0 : index
      %35 = vector.load %arg6[%c0_18, %c0_19] : memref<8x1xf32, #tpu.memory_space<vmem>>, vector<8x1xf32>
      tpu.vector_store %arg6[%c0_18, %c0_19], %23 {strides = array<i32>} : memref<8x1xf32, #tpu.memory_space<vmem>>, vector<8x1xf32>,
    } else {
    }
    %15 = arith.extui %11 : i1 to i32
    %c0_i32_7 = arith.constant 0 : i32
    %16 = arith.cmpi ne, %15, %c0_i32_7 : i32
    scf.if %16 {
      %c512_i32_10 = arith.constant 512 : i32
      %20 = arith.muli %8, %c512_i32_10 : i32
      %21 = tpu.iota {dimensions = array<i32: 1>} : vector<8x512xi32>
      %22 = vector.broadcast %20 : i32 to vector<8x512xi32>
      %23 = arith.addi %22, %21 : vector<8x512xi32>
      %c512_i32_11 = arith.constant 512 : i32
      %24 = vector.broadcast %c512_i32_11 : i32 to vector<8x512xi32>
      %25 = arith.cmpi slt, %23, %24 : vector<8x512xi32>
      %cst_12 = arith.constant -1.000000e+30 : f32
      %26 = vector.broadcast %cst_12 : f32 to vector<8x512xf32>
      %27 = arith.select %25, %6, %26 : vector<8x512xi1>, vector<8x512xf32>
      %c0_13 = arith.constant 0 : index
      %c0_14 = arith.constant 0 : index
      %28 = vector.load %arg6[%c0_13, %c0_14] : memref<8x1xf32, #tpu.memory_space<vmem>>, vector<8x1xf32>
      %cst_15 = arith.constant dense<0xFF800000> : vector<8xf32>
      %29 = vector.multi_reduction <maximumf>, %27, %cst_15 [1] : vector<8x512xf32> to vector<8xf32>
      %30 = vector.shape_cast %29 : vector<8xf32> to vector<8x1xf32>
      %31 = arith.maximumf %28, %30 : vector<8x1xf32>
      %c0_16 = arith.constant 0 : index
      %c0_17 = arith.constant 0 : index
      %32 = vector.load %arg7[%c0_16, %c0_17] : memref<8x1xf32, #tpu.memory_space<vmem>>, vector<8x1xf32>
      %33 = arith.subf %28, %31 : vector<8x1xf32>
      %34 = math.exp %33 : vector<8x1xf32>
      %35 = arith.mulf %32, %34 : vector<8x1xf32>
      %36 = vector.broadcast %31 : vector<8x1xf32> to vector<8x512xf32>
      %37 = arith.subf %27, %36 : vector<8x512xf32>
      %38 = math.exp %37 : vector<8x512xf32>
      %cst_18 = arith.constant dense<0.000000e+00> : vector<8xf32>
      %39 = vector.multi_reduction <add>, %38, %cst_18 [1] : vector<8x512xf32> to vector<8xf32>
      %40 = vector.shape_cast %39 : vector<8xf32> to vector<8x1xf32>
      %41 = arith.addf %35, %40 : vector<8x1xf32>
      %c0_19 = arith.constant 0 : index
      %c0_20 = arith.constant 0 : index
      %42 = vector.load %arg7[%c0_19, %c0_20] : memref<8x1xf32, #tpu.memory_space<vmem>>, vector<8x1xf32>
      tpu.vector_store %arg7[%c0_19, %c0_20], %41 {strides = array<i32>} : memref<8x1xf32, #tpu.memory_space<vmem>>, vector<8x1xf32>,
      %c0_21 = arith.constant 0 : index
      %c0_22 = arith.constant 0 : index
      %43 = vector.load %arg6[%c0_21, %c0_22] : memref<8x1xf32, #tpu.memory_space<vmem>>, vector<8x1xf32>
      tpu.vector_store %arg6[%c0_21, %c0_22], %31 {strides = array<i32>} : memref<8x1xf32, #tpu.memory_space<vmem>>, vector<8x1xf32>,
    } else {
    }
    %c0_i32_8 = arith.constant 0 : i32
    %17 = arith.cmpi eq, %arg1, %c0_i32_8 : i32
    %18 = arith.extui %17 : i1 to i32
    %c0_i32_9 = arith.constant 0 : i32
    %19 = arith.cmpi ne, %18, %c0_i32_9 : i32
    scf.if %19 {
      %c0_10 = arith.constant 0 : index
      %c0_11 = arith.constant 0 : index
      %20 = vector.load %arg6[%c0_10, %c0_11] : memref<8x1xf32, #tpu.memory_space<vmem>>, vector<8x1xf32>
      %c0_12 = arith.constant 0 : index
      %c0_13 = arith.constant 0 : index
      %c0_14 = arith.constant 0 : index
      %21 = vector.load %arg4[%c0_12, %c0_13, %c0_14] : memref<1x8x1xf32, #tpu.memory_space<vmem>>, vector<1x8x1xf32>
      %22 = vector.shape_cast %21 : vector<1x8x1xf32> to vector<8x1xf32>
      %23 = vector.shape_cast %20 : vector<8x1xf32> to vector<1x8x1xf32>
      tpu.vector_store %arg4[%c0_12, %c0_13, %c0_14], %23 {strides = array<i32>} : memref<1x8x1xf32, #tpu.memory_space<vmem>>, vector<1x8x1xf32>,
      %c0_15 = arith.constant 0 : index
      %c0_16 = arith.constant 0 : index
      %24 = vector.load %arg7[%c0_15, %c0_16] : memref<8x1xf32, #tpu.memory_space<vmem>>, vector<8x1xf32>
      %c0_17 = arith.constant 0 : index
      %c0_18 = arith.constant 0 : index
      %c0_19 = arith.constant 0 : index
      %25 = vector.load %arg5[%c0_17, %c0_18, %c0_19] : memref<1x8x1xf32, #tpu.memory_space<vmem>>, vector<1x8x1xf32>
      %26 = vector.shape_cast %25 : vector<1x8x1xf32> to vector<8x1xf32>
      %27 = vector.shape_cast %24 : vector<8x1xf32> to vector<1x8x1xf32>
      tpu.vector_store %arg5[%c0_17, %c0_18, %c0_19], %27 {strides = array<i32>} : memref<1x8x1xf32, #tpu.memory_space<vmem>>, vector<1x8x1xf32>,
    } else {
    }
    return
  }
  func.func @transform_0(%arg0: i32, %arg1: i32) -> (i32, i32) {
    %c0_i32 = arith.constant 0 : i32
    %c0_i32_0 = arith.constant 0 : i32
    %c0_i32_1 = arith.constant 0 : i32
    return %c0_i32, %c0_i32_0 : i32, i32
  }
  func.func @transform_1(%arg0: i32, %arg1: i32) -> (i32, i32) {
    %c1_i32 = arith.constant 1 : i32
    %0 = arith.muli %arg0, %c1_i32 : i32
    %1 = arith.addi %0, %arg1 : i32
    %c0_i32 = arith.constant 0 : i32
    %2 = arith.minsi %1, %c0_i32 : i32
    %c0_i32_0 = arith.constant 0 : i32
    %c0_i32_1 = arith.constant 0 : i32
    return %2, %c0_i32_0 : i32, i32
  }
  func.func @transform_2(%arg0: i32, %arg1: i32) -> (i32, i32, i32) {
    %c0_i32 = arith.constant 0 : i32
    %c0_i32_0 = arith.constant 0 : i32
    %c0_i32_1 = arith.constant 0 : i32
    return %arg0, %c0_i32, %c0_i32_0 : i32, i32, i32
  }
  func.func @transform_3(%arg0: i32, %arg1: i32) -> (i32, i32, i32) {
    %c0_i32 = arith.constant 0 : i32
    %c0_i32_0 = arith.constant 0 : i32
    %c0_i32_1 = arith.constant 0 : i32
    return %arg0, %c0_i32, %c0_i32_0 : i32, i32, i32
  }
}

</mosaic_0001>

<llo_original>
// kernel: tpu_custom_call.1
$region0: #{tpu_custom_call.1}
  #allocation0 [shape = 'u32[]', space=smem, size = 0x4, offset = 0x4, fixed_abs, tag = 'smem constant byte address 0x4 - core index']
  #allocation1 [shape = 'u32[144,128]{1,0:T(1,128)}', space=vmem, size = 0x12000, scoped, tag = 'internal scratch']
  #allocation2 [shape = 'f32[8,1]{1,0:T(8,128)}', space=vmem, size = 0x1000, scoped, tag = 'scratch operand']
  #allocation3 [shape = 'f32[8,1]{1,0:T(8,128)}', space=vmem, size = 0x1000, scoped, tag = 'scratch operand']
  %s0 = inlined_call_operand.vmem [shape: bf16[8,64], index: 0, kind: input, shape index: {}]
  %s1 = inlined_call_operand.vmem [shape: f32[512,64], index: 1, kind: input, shape index: {}]
  %s2 = inlined_call_operand.vmem [shape: f32[1,8,1], index: 2, kind: output, shape index: {0}]
  %s3 = inlined_call_operand.vmem [shape: f32[1,8,1], index: 3, kind: output, shape index: {1}]
  %4 = xla_tuple %s2, %s3
  %s5 = sld [smem:[#allocation0]]
  $region42: #{tpu_custom_call.1} parent=0
    _
  %s7 = ssub.s32 1, %s5
  %s8 = scalar_select 0, %s7, %s5
  // Predicated region
  $region2: #{tpu_custom_call.1} parent=0 // pred_check
    _
  $region3: #{tpu_custom_call.1} parent=0 // pred_check_branch
    %10 = sbr.rel (0) target = $region5
  $region4: #{tpu_custom_call.1} parent=0 // pred_region
    _
  $region5: #{tpu_custom_call.1} parent=0 // pred_fallthru
    _
  // Predicated region
  $region6: #{tpu_custom_call.1} parent=0 // pred_check
    _
  $region7: #{tpu_custom_call.1} parent=0 // pred_check_branch
    %12 = sbr.rel (0) target = $region9
  $region8: #{tpu_custom_call.1} parent=0 // pred_region
    %s13 = sadd.s32 0, 0
    %p14 = scmp.lt.s32.totalorder %s13, 0
    %s15 = scalar_select %p14, %s13, 0
    %s16 = smul.u32 64, %s15
    %p17 = scmp.lt.s32.totalorder %s16, 63
    %s18 = scalar_select %p17, %s16, 63
    %s19 = smul.addr %s18, 8
    %s20 = scalar_lea.vmem %s1, %s19
    %s21 = sadd.s32 0, 0
    %p22 = scmp.lt.s32.totalorder %s21, 0
    %s23 = scalar_select %p22, %s21, 0
    %s24 = smul.u32 64, %s23
  $region9: #{tpu_custom_call.1} parent=0 // pred_fallthru
    _
  %s25 = sadd.s32 0, 0
  %p26 = scmp.lt.s32.totalorder %s25, 0
  %s27 = scalar_select %p26, %s25, 0
  %s28 = smul.u32 64, %s27
  %p29 = scmp.lt.s32.totalorder %s28, 63
  %s30 = scalar_select %p29, %s28, 63
  %s31 = smul.addr %s30, 8
  %s32 = scalar_lea.vmem %s1, %s31
  %s33 = sadd.s32 0, 0
  %p34 = scmp.lt.s32.totalorder %s33, 0
  %s35 = scalar_select %p34, %s33, 0
  %s36 = smul.u32 64, %s35
  %p37 = scmp.lt.s32.totalorder %s36, 63
  %s38 = scalar_select %p37, %s36, 63
  %s39 = smul.addr %s38, 8
  %s40 = scalar_lea.vmem %s1, %s39
  %s41 = sadd.s32 0, 0
  %p42 = scmp.lt.s32.totalorder %s41, 0
  %s43 = scalar_select %p42, %s41, 0
  %s44 = smul.u32 64, %s43
  %p46 = scmp.eq.s32.totalorder 0, 0
  // Predicated region
  $region10: #{tpu_custom_call.1} parent=0 // pred_check
    %p47 = pneg %p46
  $region11: #{tpu_custom_call.1} parent=0 // pred_check_branch
    %49 = sbr.rel (%p47) target = $region13
  $region12: #{tpu_custom_call.1} parent=0 // pred_region
    %vm50 = vcmask 7168
    %51 = vst.msk [vmem:[#allocation2] sm:$0xff] %vm50, -1e+30
    %52 = vst.msk [vmem:[#allocation3] sm:$0xff] %vm50, 0.0
  $region13: #{tpu_custom_call.1} parent=0 // pred_fallthru
    _
  %v53 = vld [vmem:[%s0] sm:$0xf]
  %v54 = vld [vmem:[%s40] sm:$0xff]
  %v55 = vld [vmem:[%s40 + $0x8] sm:$0xff]
  %v56 = vld [vmem:[%s40 + $0x10] sm:$0xff]
  %v57 = vld [vmem:[%s40 + $0x18] sm:$0xff]
  %v58 = vld [vmem:[%s40 + $0x20] sm:$0xff]
  %v59 = vld [vmem:[%s40 + $0x28] sm:$0xff]
  %v60 = vld [vmem:[%s40 + $0x30] sm:$0xff]
  %v61 = vld [vmem:[%s40 + $0x38] sm:$0xff]
  %v62 = vld [vmem:[%s40 + $0x40] sm:$0xff]
  %v63 = vld [vmem:[%s40 + $0x48] sm:$0xff]
  %v64 = vld [vmem:[%s40 + $0x50] sm:$0xff]
  %v65 = vld [vmem:[%s40 + $0x58] sm:$0xff]
  %v66 = vld [vmem:[%s40 + $0x60] sm:$0xff]
  %v67 = vld [vmem:[%s40 + $0x68] sm:$0xff]
  %v68 = vld [vmem:[%s40 + $0x70] sm:$0xff]
  %v69 = vld [vmem:[%s40 + $0x78] sm:$0xff]
  %v70 = vld [vmem:[%s40 + $0x80] sm:$0xff]
  %v71 = vld [vmem:[%s40 + $0x88] sm:$0xff]
  %v72 = vld [vmem:[%s40 + $0x90] sm:$0xff]
  %v73 = vld [vmem:[%s40 + $0x98] sm:$0xff]
  %v74 = vld [vmem:[%s40 + $0xa0] sm:$0xff]
  %v75 = vld [vmem:[%s40 + $0xa8] sm:$0xff]
  %v76 = vld [vmem:[%s40 + $0xb0] sm:$0xff]
  %v77 = vld [vmem:[%s40 + $0xb8] sm:$0xff]
  %v78 = vld [vmem:[%s40 + $0xc0] sm:$0xff]
  %v79 = vld [vmem:[%s40 + $0xc8] sm:$0xff]
  %v80 = vld [vmem:[%s40 + $0xd0] sm:$0xff]
  %v81 = vld [vmem:[%s40 + $0xd8] sm:$0xff]
  %v82 = vld [vmem:[%s40 + $0xe0] sm:$0xff]
  %v83 = vld [vmem:[%s40 + $0xe8] sm:$0xff]
  %v84 = vld [vmem:[%s40 + $0xf0] sm:$0xff]
  %v85 = vld [vmem:[%s40 + $0xf8] sm:$0xff]
  %v86 = vld [vmem:[%s40 + $0x100] sm:$0xff]
  %v87 = vld [vmem:[%s40 + $0x108] sm:$0xff]
  %v88 = vld [vmem:[%s40 + $0x110] sm:$0xff]
  %v89 = vld [vmem:[%s40 + $0x118] sm:$0xff]
  %v90 = vld [vmem:[%s40 + $0x120] sm:$0xff]
  %v91 = vld [vmem:[%s40 + $0x128] sm:$0xff]
  %v92 = vld [vmem:[%s40 + $0x130] sm:$0xff]
  %v93 = vld [vmem:[%s40 + $0x138] sm:$0xff]
  %v94 = vld [vmem:[%s40 + $0x140] sm:$0xff]
  %v95 = vld [vmem:[%s40 + $0x148] sm:$0xff]
  %v96 = vld [vmem:[%s40 + $0x150] sm:$0xff]
  %v97 = vld [vmem:[%s40 + $0x158] sm:$0xff]
  %v98 = vld [vmem:[%s40 + $0x160] sm:$0xff]
  %v99 = vld [vmem:[%s40 + $0x168] sm:$0xff]
  %v100 = vld [vmem:[%s40 + $0x170] sm:$0xff]
  %v101 = vld [vmem:[%s40 + $0x178] sm:$0xff]
  %v102 = vld [vmem:[%s40 + $0x180] sm:$0xff]
  %v103 = vld [vmem:[%s40 + $0x188] sm:$0xff]
  %v104 = vld [vmem:[%s40 + $0x190] sm:$0xff]
  %v105 = vld [vmem:[%s40 + $0x198] sm:$0xff]
  %v106 = vld [vmem:[%s40 + $0x1a0] sm:$0xff]
  %v107 = vld [vmem:[%s40 + $0x1a8] sm:$0xff]
  %v108 = vld [vmem:[%s40 + $0x1b0] sm:$0xff]
  %v109 = vld [vmem:[%s40 + $0x1b8] sm:$0xff]
  %v110 = vld [vmem:[%s40 + $0x1c0] sm:$0xff]
  %v111 = vld [vmem:[%s40 + $0x1c8] sm:$0xff]
  %v112 = vld [vmem:[%s40 + $0x1d0] sm:$0xff]
  %v113 = vld [vmem:[%s40 + $0x1d8] sm:$0xff]
  %v114 = vld [vmem:[%s40 + $0x1e0] sm:$0xff]
  %v115 = vld [vmem:[%s40 + $0x1e8] sm:$0xff]
  %v116 = vld [vmem:[%s40 + $0x1f0] sm:$0xff]
  %v117 = vld [vmem:[%s40 + $0x1f8] sm:$0xff]
  %v118 = vpack.c.bf16 %v55, %v54
  %v119 = vpack.c.bf16 %v57, %v56
  %v120 = vpack.c.bf16 %v59, %v58
  %v121 = vpack.c.bf16 %v61, %v60
  %v122 = vpack.c.bf16 %v63, %v62
  %v123 = vpack.c.bf16 %v65, %v64
  %v124 = vpack.c.bf16 %v67, %v66
  %v125 = vpack.c.bf16 %v69, %v68
  %v126 = vpack.c.bf16 %v71, %v70
  %v127 = vpack.c.bf16 %v73, %v72
  %v128 = vpack.c.bf16 %v75, %v74
  %v129 = vpack.c.bf16 %v77, %v76
  %v130 = vpack.c.bf16 %v79, %v78
  %v131 = vpack.c.bf16 %v81, %v80
  %v132 = vpack.c.bf16 %v83, %v82
  %v133 = vpack.c.bf16 %v85, %v84
  %v134 = vpack.c.bf16 %v87, %v86
  %v135 = vpack.c.bf16 %v89, %v88
  %v136 = vpack.c.bf16 %v91, %v90
  %v137 = vpack.c.bf16 %v93, %v92
  %v138 = vpack.c.bf16 %v95, %v94
  %v139 = vpack.c.bf16 %v97, %v96
  %v140 = vpack.c.bf16 %v99, %v98
  %v141 = vpack.c.bf16 %v101, %v100
  %v142 = vpack.c.bf16 %v103, %v102
  %v143 = vpack.c.bf16 %v105, %v104
  %v144 = vpack.c.bf16 %v107, %v106
  %v145 = vpack.c.bf16 %v109, %v108
  %v146 = vpack.c.bf16 %v111, %v110
  %v147 = vpack.c.bf16 %v113, %v112
  %v148 = vpack.c.bf16 %v115, %v114
  %v149 = vpack.c.bf16 %v117, %v116
  %vm150 = vcmask 523264
  %v152 = vsel %vm150, %v53, 0
  %v155 = vsel %vm150, %v118, 0
  %v158 = vsel %vm150, %v119, 0
  %v161 = vsel %vm150, %v120, 0
  %v164 = vsel %vm150, %v121, 0
  %v167 = vsel %vm150, %v122, 0
  %v170 = vsel %vm150, %v123, 0
  %v173 = vsel %vm150, %v124, 0
  %v176 = vsel %vm150, %v125, 0
  %v179 = vsel %vm150, %v126, 0
  %v182 = vsel %vm150, %v127, 0
  %v185 = vsel %vm150, %v128, 0
  %v188 = vsel %vm150, %v129, 0
  %v191 = vsel %vm150, %v130, 0
  %v194 = vsel %vm150, %v131, 0
  %v197 = vsel %vm150, %v132, 0
  %v200 = vsel %vm150, %v133, 0
  %v203 = vsel %vm150, %v134, 0
  %v206 = vsel %vm150, %v135, 0
  %v209 = vsel %vm150, %v136, 0
  %v212 = vsel %vm150, %v137, 0
  %v215 = vsel %vm150, %v138, 0
  %v218 = vsel %vm150, %v139, 0
  %v221 = vsel %vm150, %v140, 0
  %v224 = vsel %vm150, %v141, 0
  %v227 = vsel %vm150, %v142, 0
  %v230 = vsel %vm150, %v143, 0
  %v233 = vsel %vm150, %v144, 0
  %v236 = vsel %vm150, %v145, 0
  %v239 = vsel %vm150, %v146, 0
  %v242 = vsel %vm150, %v147, 0
  %v245 = vsel %vm150, %v148, 0
  %v248 = vsel %vm150, %v149, 0
  %250 = vmatprep.subr.bf16.mxu0 0
  %251 = vmatpush1.bf16.xpose.msra.mxu0 %v155
  %252 = vmatprep.subr.bf16.mxu0 0
  %253 = vmatpush1.bf16.xpose.msra.mxu0 %v158
  %254 = vmatprep.subr.bf16.mxu0 0
  %255 = vmatpush1.bf16.xpose.msra.mxu0 %v161
  %256 = vmatprep.subr.bf16.mxu0 0
  %257 = vmatpush1.bf16.xpose.msra.mxu0 %v164
  %258 = vmatprep.subr.bf16.mxu0 0
  %259 = vmatpush1.bf16.xpose.msra.mxu0 %v167
  %260 = vmatprep.subr.bf16.mxu0 0
  %261 = vmatpush1.bf16.xpose.msra.mxu0 %v170
  %262 = vmatprep.subr.bf16.mxu0 0
  %263 = vmatpush1.bf16.xpose.msra.mxu0 %v173
  %264 = vmatprep.subr.bf16.mxu0 0
  %265 = vmatpush1.bf16.xpose.msra.mxu0 %v176
  %266 = vmatprep.subr.bf16.mxu0 0
  %267 = vmatpush1.bf16.xpose.msra.mxu0 %v179
  %268 = vmatprep.subr.bf16.mxu0 0
  %269 = vmatpush1.bf16.xpose.msra.mxu0 %v182
  %270 = vmatprep.subr.bf16.mxu0 0
  %271 = vmatpush1.bf16.xpose.msra.mxu0 %v185
  %272 = vmatprep.subr.bf16.mxu0 0
  %273 = vmatpush1.bf16.xpose.msra.mxu0 %v188
  %274 = vmatprep.subr.bf16.mxu0 0
  %275 = vmatpush1.bf16.xpose.msra.mxu0 %v191
  %276 = vmatprep.subr.bf16.mxu0 0
  %277 = vmatpush1.bf16.xpose.msra.mxu0 %v194
  %278 = vmatprep.subr.bf16.mxu0 0
  %279 = vmatpush1.bf16.xpose.msra.mxu0 %v197
  %280 = vmatprep.subr.bf16.mxu0 0
  %281 = vmatpush1.bf16.xpose.msra.mxu0 %v200
  %282 = vmatprep.mubr.bf16.mxu0 0
  %283 = vmatmul.mubr.bf16.gmra.mrb[0].mxu0 %v152
  %v284 = vpop.f32.mrb[0].mxu0
  %v285 = vadd.f32 0.0, %v284
  %v286 = vpop.f32.mrb[0].mxu0
  %v287 = vadd.f32 0.0, %v286
  %v288 = vpop.f32.mrb[0].mxu0
  %v289 = vpop.f32.mrb[0].mxu0
  %290 = vdwg.mxu0
  %291 = vmatprep.subr.bf16.mxu0 0
  %292 = vmatpush1.bf16.xpose.msra.mxu0 %v203
  %293 = vmatprep.subr.bf16.mxu0 0
  %294 = vmatpush1.bf16.xpose.msra.mxu0 %v206
  %295 = vmatprep.subr.bf16.mxu0 0
  %296 = vmatpush1.bf16.xpose.msra.mxu0 %v209
  %297 = vmatprep.subr.bf16.mxu0 0
  %298 = vmatpush1.bf16.xpose.msra.mxu0 %v212
  %299 = vmatprep.subr.bf16.mxu0 0
  %300 = vmatpush1.bf16.xpose.msra.mxu0 %v215
  %301 = vmatprep.subr.bf16.mxu0 0
  %302 = vmatpush1.bf16.xpose.msra.mxu0 %v218
  %303 = vmatprep.subr.bf16.mxu0 0
  %304 = vmatpush1.bf16.xpose.msra.mxu0 %v221
  %305 = vmatprep.subr.bf16.mxu0 0
  %306 = vmatpush1.bf16.xpose.msra.mxu0 %v224
  %307 = vmatprep.subr.bf16.mxu0 0
  %308 = vmatpush1.bf16.xpose.msra.mxu0 %v227
  %309 = vmatprep.subr.bf16.mxu0 0
  %310 = vmatpush1.bf16.xpose.msra.mxu0 %v230
  %311 = vmatprep.subr.bf16.mxu0 0
  %312 = vmatpush1.bf16.xpose.msra.mxu0 %v233
  %313 = vmatprep.subr.bf16.mxu0 0
  %314 = vmatpush1.bf16.xpose.msra.mxu0 %v236
  %315 = vmatprep.subr.bf16.mxu0 0
  %316 = vmatpush1.bf16.xpose.msra.mxu0 %v239
  %317 = vmatprep.subr.bf16.mxu0 0
  %318 = vmatpush1.bf16.xpose.msra.mxu0 %v242
  %319 = vmatprep.subr.bf16.mxu0 0
  %320 = vmatpush1.bf16.xpose.msra.mxu0 %v245
  %321 = vmatprep.subr.bf16.mxu0 0
  %322 = vmatpush1.bf16.xpose.msra.mxu0 %v248
  %323 = vmatprep.mubr.bf16.mxu0 0
  %324 = vmatmul.mubr.bf16.gmra.mrb[0].mxu0 %v152
  %v325 = vpop.f32.mrb[0].mxu0
  %v326 = vadd.f32 0.0, %v325
  %v327 = vpop.f32.mrb[0].mxu0
  %v328 = vadd.f32 0.0, %v327
  %v329 = vpop.f32.mrb[0].mxu0
  %v330 = vpop.f32.mrb[0].mxu0
  %331 = vdwg.mxu0
  %s332 = sadd.s32 0, 0
  %s333 = sadd.s32 %s332, 1
  %s334 = smul.u32 %s333, 512
  %p335 = scmp.gt.s32.totalorder %s334, 512
  %p336 = scmp.le.s32.totalorder %s334, 512
  // Predicated region
  $region14: #{tpu_custom_call.1} parent=0 // pred_check
    %p337 = pneg %p336
  $region15: #{tpu_custom_call.1} parent=0 // pred_check_branch
    %339 = sbr.rel (%p337) target = $region17
  $region16: #{tpu_custom_call.1} parent=0 // pred_region
    %v340 = vld [vmem:[#allocation2] sm:$0xff]
    %v341 = vmax.f32 %v285, %v287
    %v342 = vmax.f32 %v326, %v328
    %v343 = vmax.f32 %v341, %v342
    %344 = vmax.xlane.f32.xlu0 %v343
    %v345 = vpop.xlane.xlu0 %344
    %v346 = vmax.f32 %v340, %v345
    %v347 = vld [vmem:[#allocation3] sm:$0xff]
    %v348 = vsub.f32 %v340, %v346
    %v349 = vmul.f32 %v348, 1.442695
    %v350 = vpow.pop %v349
    %v351 = vmul.f32 %v347, %v350
    %353 = vset.pattern.permute.xlu0 0
    %354 = vperm.xlu0 %353, %v346
    %v355 = vpop.permute.xlu0 %354
    %v357 = vsub.f32 %v285, %v355
    %v358 = vsub.f32 %v287, %v355
    %v359 = vsub.f32 %v326, %v355
    %v360 = vsub.f32 %v328, %v355
    %v361 = vmul.f32 %v357, 1.442695
    %v362 = vpow.pop %v361
    %v363 = vmul.f32 %v358, 1.442695
    %v364 = vpow.pop %v363
    %v365 = vmul.f32 %v359, 1.442695
    %v366 = vpow.pop %v365
    %v367 = vmul.f32 %v360, 1.442695
    %v368 = vpow.pop %v367
    %v369 = vadd.f32 %v362, %v364
    %v370 = vadd.f32 %v369, %v366
    %v371 = vadd.f32 %v370, %v368
    %372 = vadd.xlane.f32.xlu0 %v371
    %v373 = vpop.xlane.xlu0 %372
    %v374 = vadd.f32 %v351, %v373
    %vm375 = vcmask 7168
    %376 = vst.msk [vmem:[#allocation3] sm:$0xff] %vm375, %v374
    %377 = vst.msk [vmem:[#allocation2] sm:$0xff] %vm375, %v346
  $region17: #{tpu_custom_call.1} parent=0 // pred_fallthru
    _
  // Predicated region
  $region18: #{tpu_custom_call.1} parent=0 // pred_check
    %p378 = pneg %p335
  $region19: #{tpu_custom_call.1} parent=0 // pred_check_branch
    %380 = sbr.rel (%p378) target = $region21
  $region20: #{tpu_custom_call.1} parent=0 // pred_region
    %s381 = smul.u32 %s332, 512
    %v382 = vlaneseq
    %v383 = vand.u32 %v382, 127
    %v384 = vadd.s32 %v383, 128
    %v385 = vadd.s32 %v383, 256
    %v386 = vadd.s32 %v383, 384
    %v387 = vstv %s381
    %v388 = vadd.s32 %v387, %v383
    %v389 = vadd.s32 %v387, %v384
    %v390 = vadd.s32 %v387, %v385
    %v391 = vadd.s32 %v387, %v386
    %vm392 = vcmp.lt.s32.totalorder %v388, 512
    %vm393 = vcmp.lt.s32.totalorder %v389, 512
    %vm394 = vcmp.lt.s32.totalorder %v390, 512
    %vm395 = vcmp.lt.s32.totalorder %v391, 512
    %v396 = vsel %vm392, %v285, -1e+30
    %v397 = vsel %vm393, %v287, -1e+30
    %v398 = vsel %vm394, %v326, -1e+30
    %v399 = vsel %vm395, %v328, -1e+30
    %v400 = vld [vmem:[#allocation2] sm:$0xff]
    %v401 = vmax.f32 %v396, %v397
    %v402 = vmax.f32 %v398, %v399
    %v403 = vmax.f32 %v401, %v402
    %404 = vmax.xlane.f32.xlu0 %v403
    %v405 = vpop.xlane.xlu0 %404
    %v406 = vmax.f32 %v400, %v405
    %v407 = vld [vmem:[#allocation3] sm:$0xff]
    %v408 = vsub.f32 %v400, %v406
    %v409 = vmul.f32 %v408, 1.442695
    %v410 = vpow.pop %v409
    %v411 = vmul.f32 %v407, %v410
    %413 = vset.pattern.permute.xlu0 0
    %414 = vperm.xlu0 %413, %v406
    %v415 = vpop.permute.xlu0 %414
    %v417 = vsub.f32 %v396, %v415
    %v418 = vsub.f32 %v397, %v415
    %v419 = vsub.f32 %v398, %v415
    %v420 = vsub.f32 %v399, %v415
    %v421 = vmul.f32 %v417, 1.442695
    %v422 = vpow.pop %v421
    %v423 = vmul.f32 %v418, 1.442695
    %v424 = vpow.pop %v423
    %v425 = vmul.f32 %v419, 1.442695
    %v426 = vpow.pop %v425
    %v427 = vmul.f32 %v420, 1.442695
    %v428 = vpow.pop %v427
    %v429 = vadd.f32 %v422, %v424
    %v430 = vadd.f32 %v429, %v426
    %v431 = vadd.f32 %v430, %v428
    %432 = vadd.xlane.f32.xlu0 %v431
    %v433 = vpop.xlane.xlu0 %432
    %v434 = vadd.f32 %v411, %v433
    %vm435 = vcmask 7168
    %436 = vst.msk [vmem:[#allocation3] sm:$0xff] %vm435, %v434
    %437 = vst.msk [vmem:[#allocation2] sm:$0xff] %vm435, %v406
  $region21: #{tpu_custom_call.1} parent=0 // pred_fallthru
    _
  // Predicated region
  $region22: #{tpu_custom_call.1} parent=0 // pred_check
    %p438 = pneg %p46
  $region23: #{tpu_custom_call.1} parent=0 // pred_check_branch
    %440 = sbr.rel (%p438) target = $region25
  $region24: #{tpu_custom_call.1} parent=0 // pred_region
    %v441 = vld [vmem:[#allocation2] sm:$0xff]
    %vm442 = vcmask 7168
    %443 = vst.msk [vmem:[%s2] sm:$0xff] %vm442, %v441
    %v444 = vld [vmem:[#allocation3] sm:$0xff]
    %445 = vst.msk [vmem:[%s3] sm:$0xff] %vm442, %v444
  $region25: #{tpu_custom_call.1} parent=0 // pred_fallthru
    _
  // Predicated region
  $region26: #{tpu_custom_call.1} parent=0 // pred_check
    _
  $region27: #{tpu_custom_call.1} parent=0 // pred_check_branch
    %447 = sbr.rel (0) target = $region29
  $region28: #{tpu_custom_call.1} parent=0 // pred_region
    _
  $region29: #{tpu_custom_call.1} parent=0 // pred_fallthru
    _
  // Predicated region
  $region30: #{tpu_custom_call.1} parent=0 // pred_check
    _
  $region31: #{tpu_custom_call.1} parent=0 // pred_check_branch
    %449 = sbr.rel (0) target = $region33
  $region32: #{tpu_custom_call.1} parent=0 // pred_region
    _
  $region33: #{tpu_custom_call.1} parent=0 // pred_fallthru
    _
  // Predicated region
  $region34: #{tpu_custom_call.1} parent=0 // pred_check
    _
  $region35: #{tpu_custom_call.1} parent=0 // pred_check_branch
    %451 = sbr.rel (0) target = $region37
  $region36: #{tpu_custom_call.1} parent=0 // pred_region
    _
  $region37: #{tpu_custom_call.1} parent=0 // pred_fallthru
    _
  // Predicated region
  $region38: #{tpu_custom_call.1} parent=0 // pred_check
    _
  $region39: #{tpu_custom_call.1} parent=0 // pred_check_branch
    %453 = sbr.rel (0) target = $region41
  $region40: #{tpu_custom_call.1} parent=0 // pred_region
    _
  $region41: #{tpu_custom_call.1} parent=0 // pred_fallthru
    _

</llo_original>
